<compile_context>
chip_gen: v5e
topology: v5e:2x2
jax: 0.10.0
libtpu: 0.0.40
codegen_flags: <defaults>
</compile_context>

<pallas_src>
import math

import jax
import jax.numpy as jnp
import numpy as np
from jax import lax
from jax.experimental import pallas as pl
from jax.experimental.pallas import tpu as pltpu

MLP_HIDDEN = 128  # fixed by the module: GLinear(cv, 128, nr) -> GLinear(128, cv, nr)


def _argmax_onehot_last(x):
    """One-hot of argmax along the last axis (first occurrence on ties).

    NOTE: diverges from argmax semantics only if x contains NaNs (then the mask
    is all-zero); harmless for sane inputs.
    """
    n = x.shape[-1]
    iota = lax.broadcasted_iota(jnp.int32, x.shape, x.ndim - 1)
    maxv = jnp.max(x, axis=-1, keepdims=True)
    idx = jnp.min(jnp.where(x >= maxv, iota, n), axis=-1, keepdims=True)
    return (iota == idx).astype(x.dtype)


def rule_network_kernel(hidden_ref, rules_ref,
                        wq1_ref, bq1_ref, wk_ref, bk_ref, wq2_ref, bq2_ref,
                        mw1_ref, mb1_ref, mw2_ref, mb2_ref, e2_ref,
                        out_ref):
    f32 = jnp.float32
    hidden = hidden_ref[...]                                    # (TB, NV, CV) f32
    rules = rules_ref[...]                                      # (NR, CR)     f32
    tb, nv, cv = hidden.shape
    nr = rules.shape[0]
    cm1 = wq1_ref.shape[-1]                                     # 32

    # ---- fused key projections (selector1 | selector2): one 2D MXU matmul ----
    hidden2d = hidden.reshape(tb * nv, cv)                      # (TB*NV, CV)
    keys = jnp.dot(hidden2d, wk_ref[...],
                   preferred_element_type=f32) + bk_ref[...]    # (TB*NV, 48)
    w1 = keys[:, :cm1]                                          # (TB*NV, 32)
    w2 = keys[:, cm1:].reshape(tb, nv, -1)                      # (TB, NV, 16)

    # ---- selector1 (wq1/bq1 pre-scaled by 1/sqrt(32) host-side) ----
    r1 = jnp.dot(rules, wq1_ref[...],
                 preferred_element_type=f32) + bq1_ref[...]     # (NR, 32)
    att1 = jnp.einsum('xm,rm->xr', w1, r1,
                      preferred_element_type=f32)               # (TB*NV, NR)
    # argmax over the flattened (rule, slot) grid -> one-hot over rules.
    # max over slots (exact), then first-max one-hot over rules == PyTorch
    # flatten-argmax tie-breaking (smallest rule index wins).
    rmax = jnp.max(att1.reshape(tb, nv, nr), axis=1)            # (TB, NR)
    mask_r = _argmax_onehot_last(rmax)                          # (TB, NR) one-hot

    var_r = jnp.dot(mask_r, rules, preferred_element_type=f32)  # (TB, CR)

    # ---- selector2 (wq2/bq2 pre-scaled by 1/sqrt(16) host-side) ----
    r2 = jnp.dot(var_r, wq2_ref[...],
                 preferred_element_type=f32) + bq2_ref[...]     # (TB, 16)
    att2 = jnp.sum(w2 * r2[:, None, :], axis=-1)                # (TB, NV)
    mask2 = _argmax_onehot_last(att2)                           # (TB, NV)
    var_p = jnp.sum(hidden * mask2[:, :, None], axis=1)         # (TB, CV)

    # ---- per-rule MLP as two lane-dense 2D matmuls (bf16 weights, f32 acc) ----
    # layer 1 for all rules stacked along lanes: (TB, CV) x (CV, NR*128)
    h1 = jnp.dot(var_p.astype(mw1_ref.dtype), mw1_ref[...],
                 preferred_element_type=f32) + mb1_ref[...]     # (TB, NR*128)
    h1 = jnp.maximum(h1, 0.0)
    # zero the non-selected rule lane-groups, then contract against the stacked
    # second-layer weights: only the selected rule contributes.
    m2 = jnp.dot(mask_r, e2_ref[...],
                 preferred_element_type=f32)                    # (TB, NR*128)
    h2 = jnp.dot((h1 * m2).astype(mw2_ref.dtype), mw2_ref[...],
                 preferred_element_type=f32)                    # (TB, CV)
    h2 = h2 + jnp.dot(mask_r, mb2_ref[...],
                      preferred_element_type=f32)               # selected bias
    out_ref[...] = h2.astype(out_ref.dtype)


def prepare_params(params, weight_dtype=jnp.bfloat16):
    """One-time host-side parameter prep: fold temperatures, fuse the key
    projections, restack + bf16-cast the per-rule MLP weights."""
    nr = params['rule_embeds'].shape[0]
    cv = params['wk1'].shape[0]
    dh = params['mw1'].shape[-1]
    inv1 = 1.0 / math.sqrt(params['wq1'].shape[1])   # 1/sqrt(32)
    inv2 = 1.0 / math.sqrt(params['wq2'].shape[1])   # 1/sqrt(16)
    return dict(
        rules=params['rule_embeds'],
        wq1=params['wq1'] * inv1, bq1=params['bq1'] * inv1,
        wq2=params['wq2'] * inv2, bq2=params['bq2'] * inv2,
        wk=jnp.concatenate([params['wk1'], params['wk2']], axis=1),   # (CV, 48)
        bk=jnp.concatenate([params['bk1'], params['bk2']], axis=1),   # (1, 48)
        # layer-1 weights stacked along lanes: [c, r*128+d] = mw1[r, c, d]
        mw1=jnp.transpose(params['mw1'], (1, 0, 2)).reshape(cv, nr * dh).astype(weight_dtype),
        mb1=params['mb1'].reshape(1, nr * dh),
        # layer-2 weights stacked along rows: [r*128+d, c] = mw2[r, d, c]
        mw2=params['mw2'].reshape(nr * dh, cv).astype(weight_dtype),
        mb2=params['mb2'],
        # lane-group expansion of the rule one-hot: (NR, NR*128)
        e2=jnp.repeat(jnp.eye(nr, dtype=jnp.float32), dh, axis=1),
    )


def rule_network_forward(hidden, prep):
    b, nv, cv = hidden.shape

    # Batch tile: whole batch at toy sizes; multiple-of-8 tiles for large
    # batches so the "parallel" grid axis shards across TensorCores (v7x).
    if b > 8 and b % 8 == 0:
        tb = 8
        while tb * 2 <= min(b, 256) and b % (tb * 2) == 0:
            tb *= 2
    else:
        tb = b
    grid = (b // tb,)

    order = ('rules', 'wq1', 'bq1', 'wk', 'bk', 'wq2', 'bq2',
             'mw1', 'mb1', 'mw2', 'mb2', 'e2')
    consts = [prep[k] for k in order]

    def const_spec(a):
        nd = a.ndim
        return pl.BlockSpec(a.shape, lambda i: (0,) * nd)

    in_specs = ([pl.BlockSpec((tb, nv, cv), lambda i: (i, 0, 0))]
                + [const_spec(a) for a in consts])
    out_specs = pl.BlockSpec((tb, cv), lambda i: (i, 0))

    return pl.pallas_call(
        rule_network_kernel,
        out_shape=jax.ShapeDtypeStruct((b, cv), jnp.float32),
        grid_spec=pltpu.PrefetchScalarGridSpec(
            num_scalar_prefetch=0,
            grid=grid,
            in_specs=in_specs,
            out_specs=out_specs,
        ),
        compiler_params=pltpu.CompilerParams(
            dimension_semantics=("parallel",)),
    )(hidden, *consts)


def rule_network_reference(hidden, params):
    """Pure-JAX mirror of the PyTorch eval-mode forward (for verification)."""
    b, nv, cv = hidden.shape
    rules = params['rule_embeds']
    nr, cr = rules.shape

    r1 = rules @ params['wq1'] + params['bq1']                                   # (NR,32)
    w1 = hidden @ params['wk1'] + params['bk1']                                  # (B,NV,32)
    att1 = jnp.einsum('rm,bvm->brv', r1, w1) / np.sqrt(32.0)                     # (B,NR,NV)

    flat1 = att1.reshape(b, nr * nv)
    idx1 = jnp.argmax(flat1, axis=1)
    mask1 = jax.nn.one_hot(idx1, nr * nv, dtype=flat1.dtype).reshape(b, nr, nv)
    mask_r = mask1.sum(axis=2)                                                   # (B,NR)
    var_r = mask_r @ rules                                                       # (B,CR)

    r2 = var_r @ params['wq2'] + params['bq2']                                   # (B,16)
    w2 = hidden @ params['wk2'] + params['bk2']                                  # (B,NV,16)
    att2 = jnp.einsum('bm,bvm->bv', r2, w2) / np.sqrt(16.0)                      # (B,NV)
    mask2 = jax.nn.one_hot(jnp.argmax(att2, axis=1), nv, dtype=att2.dtype)       # (B,NV)
    var_p = (hidden * mask2[:, :, None]).sum(axis=1)                             # (B,CV)

    inp = jnp.broadcast_to(var_p[:, None, :], (b, nr, cv))                       # (B,NR,CV)
    h1 = jnp.einsum('brc,rcd->brd', inp, params['mw1']) + params['mb1']          # (B,NR,128)
    h1 = jnp.maximum(h1, 0.0)
    h2 = jnp.einsum('brd,rdc->brc', h1, params['mw2']) + params['mb2']           # (B,NR,CV)
    return (h2 * mask_r[:, :, None]).sum(axis=1)                                 # (B,CV)


def init_params(key, nr, cr, nv, cv):
    ks = jax.random.split(key, 13)
    a1q = 1.0 / math.sqrt(cr)           # nn.Linear-style fan-in bound (synthetic init)
    a1k = 1.0 / math.sqrt(cv)
    a_m1 = 1.0 / math.sqrt(MLP_HIDDEN)  # GLinear uses 1/sqrt(dout)
    a_m2 = 1.0 / math.sqrt(cv)
    u = lambda k, shape, a: jax.random.uniform(k, shape, jnp.float32, -a, a)
    return {
        'rule_embeds': jax.random.normal(ks[0], (nr, cr), jnp.float32),
        # selector1 (cm=32), shared nn.Linear q/k
        'wq1': u(ks[1], (cr, 32), a1q), 'bq1': u(ks[2], (1, 32), a1q),
        'wk1': u(ks[3], (cv, 32), a1k), 'bk1': u(ks[4], (1, 32), a1k),
        # selector2 (cm=16), shared nn.Linear q/k
        'wq2': u(ks[5], (cr, 16), a1q), 'bq2': u(ks[6], (1, 16), a1q),
        'wk2': u(ks[7], (cv, 16), a1k), 'bk2': u(ks[8], (1, 16), a1k),
        # rule MLP: GLinear(cv,128,nr) -> ReLU -> GLinear(128,cv,nr)
        'mw1': u(ks[9], (nr, cv, MLP_HIDDEN), a_m1), 'mb1': u(ks[10], (nr, MLP_HIDDEN), a_m1),
        'mw2': u(ks[11], (nr, MLP_HIDDEN, cv), a_m2), 'mb2': u(ks[12], (nr, cv), a_m2),
    }


if __name__ == "__main__":
    B, NV, CV = 2, 4, 32       # hidden: (batch, num variable slots, channels per slot)
    NR, CR = 6, 16             # number of rules, rule-embedding channels

    key = jax.random.PRNGKey(0)
    k_h, k_p = jax.random.split(key)
    hidden = jax.random.normal(k_h, (B, NV, CV), jnp.float32)
    params = init_params(k_p, NR, CR, NV, CV)
    prep = prepare_params(params)

    out = jax.block_until_ready(rule_network_forward(hidden, prep))
    ref = jax.block_until_ready(rule_network_reference(hidden, params))
    assert out.shape == (B, CV)
    # Relaxed tolerance: kernel stores/consumes the per-rule MLP weights in
    # bfloat16 (f32 accumulation); selector path (argmax decisions) stays f32.
    np.testing.assert_allclose(np.asarray(out), np.asarray(ref), rtol=2e-2, atol=2e-2)

    print("KERNEL_OK")
</pallas_src>

<mosaic_0001>
module attributes {stable_mosaic.version = 11 : i64} {
  func.func @rule_network_kernel(%arg0: i32, %arg1: memref<2x4x32xf32, #tpu.memory_space<vmem>>, %arg2: memref<6x16xf32, #tpu.memory_space<vmem>>, %arg3: memref<16x32xf32, #tpu.memory_space<vmem>>, %arg4: memref<1x32xf32, #tpu.memory_space<vmem>>, %arg5: memref<32x48xf32, #tpu.memory_space<vmem>>, %arg6: memref<1x48xf32, #tpu.memory_space<vmem>>, %arg7: memref<16x16xf32, #tpu.memory_space<vmem>>, %arg8: memref<1x16xf32, #tpu.memory_space<vmem>>, %arg9: memref<32x768xbf16, #tpu.memory_space<vmem>>, %arg10: memref<1x768xf32, #tpu.memory_space<vmem>>, %arg11: memref<768x32xbf16, #tpu.memory_space<vmem>>, %arg12: memref<6x32xf32, #tpu.memory_space<vmem>>, %arg13: memref<6x768xf32, #tpu.memory_space<vmem>>, %arg14: memref<2x32xf32, #tpu.memory_space<vmem>>) attributes {dimension_semantics = [#tpu.dimension_semantics<parallel>], iteration_bounds = array<i64: 1>, scalar_prefetch = 0 : i64, scratch_operands = 0 : i64, tpu.core_type = #tpu.core_type<tc>, window_params = [{transform_indices = @transform_0, window_bounds = array<i64: 2, 4, 32>}, {pipeline_mode = #tpu.pipeline_mode<synchronous>, transform_indices = @transform_1, window_bounds = array<i64: 6, 16>}, {pipeline_mode = #tpu.pipeline_mode<synchronous>, transform_indices = @transform_2, window_bounds = array<i64: 16, 32>}, {pipeline_mode = #tpu.pipeline_mode<synchronous>, transform_indices = @transform_3, window_bounds = array<i64: 1, 32>}, {pipeline_mode = #tpu.pipeline_mode<synchronous>, transform_indices = @transform_4, window_bounds = array<i64: 32, 48>}, {pipeline_mode = #tpu.pipeline_mode<synchronous>, transform_indices = @transform_5, window_bounds = array<i64: 1, 48>}, {pipeline_mode = #tpu.pipeline_mode<synchronous>, transform_indices = @transform_6, window_bounds = array<i64: 16, 16>}, {pipeline_mode = #tpu.pipeline_mode<synchronous>, transform_indices = @transform_7, window_bounds = array<i64: 1, 16>}, {pipeline_mode = #tpu.pipeline_mode<synchronous>, transform_indices = @transform_8, window_bounds = array<i64: 32, 768>}, {pipeline_mode = #tpu.pipeline_mode<synchronous>, transform_indices = @transform_9, window_bounds = array<i64: 1, 768>}, {pipeline_mode = #tpu.pipeline_mode<synchronous>, transform_indices = @transform_10, window_bounds = array<i64: 768, 32>}, {pipeline_mode = #tpu.pipeline_mode<synchronous>, transform_indices = @transform_11, window_bounds = array<i64: 6, 32>}, {pipeline_mode = #tpu.pipeline_mode<synchronous>, transform_indices = @transform_12, window_bounds = array<i64: 6, 768>}, {transform_indices = @transform_13, window_bounds = array<i64: 2, 32>}]} {
    %c0 = arith.constant 0 : index
    %c0_0 = arith.constant 0 : index
    %c0_1 = arith.constant 0 : index
    %0 = vector.load %arg1[%c0, %c0_0, %c0_1] : memref<2x4x32xf32, #tpu.memory_space<vmem>>, vector<2x4x32xf32>
    %c0_2 = arith.constant 0 : index
    %c0_3 = arith.constant 0 : index
    %1 = vector.load %arg2[%c0_2, %c0_3] : memref<6x16xf32, #tpu.memory_space<vmem>>, vector<6x16xf32>
    %2 = vector.shape_cast %0 : vector<2x4x32xf32> to vector<8x32xf32>
    %c0_4 = arith.constant 0 : index
    %c0_5 = arith.constant 0 : index
    %3 = vector.load %arg5[%c0_4, %c0_5] : memref<32x48xf32, #tpu.memory_space<vmem>>, vector<32x48xf32>
    %cst = arith.constant dense<0.000000e+00> : vector<8x48xf32>
    %4 = tpu.matmul %2, %3, %cst {dimension_numbers = #tpu.dot_dimension_numbers<[1], [0], [0], [1], [0, 0, 1, 1], [], []>} : vector<8x32xf32>, vector<32x48xf32>, vector<8x48xf32> -> vector<8x48xf32>
    %c0_6 = arith.constant 0 : index
    %c0_7 = arith.constant 0 : index
    %5 = vector.load %arg6[%c0_6, %c0_7] : memref<1x48xf32, #tpu.memory_space<vmem>>, vector<1x48xf32>
    %6 = vector.broadcast %5 : vector<1x48xf32> to vector<8x48xf32>
    %7 = arith.addf %4, %6 : vector<8x48xf32>
    %8 = vector.extract_strided_slice %7 {offsets = [0, 0], sizes = [8, 32], strides = [1, 1]} : vector<8x48xf32> to vector<8x32xf32>
    %9 = vector.extract_strided_slice %7 {offsets = [0, 32], sizes = [8, 16], strides = [1, 1]} : vector<8x48xf32> to vector<8x16xf32>
    %10 = vector.shape_cast %9 : vector<8x16xf32> to vector<2x4x16xf32>
    %c0_8 = arith.constant 0 : index
    %c0_9 = arith.constant 0 : index
    %11 = vector.load %arg3[%c0_8, %c0_9] : memref<16x32xf32, #tpu.memory_space<vmem>>, vector<16x32xf32>
    %cst_10 = arith.constant dense<0.000000e+00> : vector<6x32xf32>
    %12 = tpu.matmul %1, %11, %cst_10 {dimension_numbers = #tpu.dot_dimension_numbers<[1], [0], [0], [1], [0, 0, 1, 1], [], []>} : vector<6x16xf32>, vector<16x32xf32>, vector<6x32xf32> -> vector<6x32xf32>
    %c0_11 = arith.constant 0 : index
    %c0_12 = arith.constant 0 : index
    %13 = vector.load %arg4[%c0_11, %c0_12] : memref<1x32xf32, #tpu.memory_space<vmem>>, vector<1x32xf32>
    %14 = vector.broadcast %13 : vector<1x32xf32> to vector<6x32xf32>
    %15 = arith.addf %12, %14 : vector<6x32xf32>
    "tpu.trace_start"() <{level = 10 : i32, message = "xm,rm->xr"}> : () -> ()
    %cst_13 = arith.constant dense<0.000000e+00> : vector<8x6xf32>
    %16 = tpu.matmul %8, %15, %cst_13 {dimension_numbers = #tpu.dot_dimension_numbers<[1], [1], [0], [0], [0, 0, 1, 0], [], []>} : vector<8x32xf32>, vector<6x32xf32>, vector<8x6xf32> -> vector<8x6xf32>
    "tpu.trace_stop"() : () -> ()
    %17 = vector.shape_cast %16 : vector<8x6xf32> to vector<2x4x6xf32>
    %cst_14 = arith.constant dense<0xFF800000> : vector<2x6xf32>
    %18 = vector.multi_reduction <maximumf>, %17, %cst_14 [1] : vector<2x4x6xf32> to vector<2x6xf32>
    %19 = tpu.iota {dimensions = array<i32: 1>} : vector<2x6xi32>
    %cst_15 = arith.constant dense<0xFF800000> : vector<2xf32>
    %20 = vector.multi_reduction <maximumf>, %18, %cst_15 [1] : vector<2x6xf32> to vector<2xf32>
    %21 = vector.shape_cast %20 : vector<2xf32> to vector<2x1xf32>
    %22 = vector.broadcast %21 : vector<2x1xf32> to vector<2x6xf32>
    %23 = arith.cmpf oge, %18, %22 : vector<2x6xf32>
    %c6_i32 = arith.constant 6 : i32
    %24 = vector.broadcast %c6_i32 : i32 to vector<2x6xi32>
    %25 = arith.select %23, %19, %24 : vector<2x6xi1>, vector<2x6xi32>
    %cst_16 = arith.constant dense<2147483647> : vector<2xi32>
    %26 = vector.multi_reduction <minsi>, %25, %cst_16 [1] : vector<2x6xi32> to vector<2xi32>
    %27 = vector.shape_cast %26 : vector<2xi32> to vector<2x1xi32>
    %28 = vector.broadcast %27 : vector<2x1xi32> to vector<2x6xi32>
    %29 = arith.cmpi eq, %19, %28 : vector<2x6xi32>
    %30 = arith.extui %29 : vector<2x6xi1> to vector<2x6xi32>
    %31 = arith.sitofp %30 : vector<2x6xi32> to vector<2x6xf32>
    %cst_17 = arith.constant dense<0.000000e+00> : vector<2x16xf32>
    %32 = tpu.matmul %31, %1, %cst_17 {dimension_numbers = #tpu.dot_dimension_numbers<[1], [0], [0], [1], [0, 0, 1, 1], [], []>} : vector<2x6xf32>, vector<6x16xf32>, vector<2x16xf32> -> vector<2x16xf32>
    %c0_18 = arith.constant 0 : index
    %c0_19 = arith.constant 0 : index
    %33 = vector.load %arg7[%c0_18, %c0_19] : memref<16x16xf32, #tpu.memory_space<vmem>>, vector<16x16xf32>
    %cst_20 = arith.constant dense<0.000000e+00> : vector<2x16xf32>
    %34 = tpu.matmul %32, %33, %cst_20 {dimension_numbers = #tpu.dot_dimension_numbers<[1], [0], [0], [1], [0, 0, 1, 1], [], []>} : vector<2x16xf32>, vector<16x16xf32>, vector<2x16xf32> -> vector<2x16xf32>
    %c0_21 = arith.constant 0 : index
    %c0_22 = arith.constant 0 : index
    %35 = vector.load %arg8[%c0_21, %c0_22] : memref<1x16xf32, #tpu.memory_space<vmem>>, vector<1x16xf32>
    %36 = vector.broadcast %35 : vector<1x16xf32> to vector<2x16xf32>
    %37 = arith.addf %34, %36 : vector<2x16xf32>
    %38 = vector.shape_cast %37 : vector<2x16xf32> to vector<2x1x16xf32>
    %39 = vector.broadcast %38 : vector<2x1x16xf32> to vector<2x4x16xf32>
    %40 = arith.mulf %10, %39 : vector<2x4x16xf32>
    %cst_23 = arith.constant dense<0.000000e+00> : vector<2x4xf32>
    %41 = vector.multi_reduction <add>, %40, %cst_23 [2] : vector<2x4x16xf32> to vector<2x4xf32>
    %42 = tpu.iota {dimensions = array<i32: 1>} : vector<2x4xi32>
    %cst_24 = arith.constant dense<0xFF800000> : vector<2xf32>
    %43 = vector.multi_reduction <maximumf>, %41, %cst_24 [1] : vector<2x4xf32> to vector<2xf32>
    %44 = vector.shape_cast %43 : vector<2xf32> to vector<2x1xf32>
    %45 = vector.broadcast %44 : vector<2x1xf32> to vector<2x4xf32>
    %46 = arith.cmpf oge, %41, %45 : vector<2x4xf32>
    %c4_i32 = arith.constant 4 : i32
    %47 = vector.broadcast %c4_i32 : i32 to vector<2x4xi32>
    %48 = arith.select %46, %42, %47 : vector<2x4xi1>, vector<2x4xi32>
    %cst_25 = arith.constant dense<2147483647> : vector<2xi32>
    %49 = vector.multi_reduction <minsi>, %48, %cst_25 [1] : vector<2x4xi32> to vector<2xi32>
    %50 = vector.shape_cast %49 : vector<2xi32> to vector<2x1xi32>
    %51 = vector.broadcast %50 : vector<2x1xi32> to vector<2x4xi32>
    %52 = arith.cmpi eq, %42, %51 : vector<2x4xi32>
    %53 = arith.extui %52 : vector<2x4xi1> to vector<2x4xi32>
    %54 = arith.sitofp %53 : vector<2x4xi32> to vector<2x4xf32>
    %55 = vector.shape_cast %54 : vector<2x4xf32> to vector<2x4x1xf32>
    %56 = vector.broadcast %55 : vector<2x4x1xf32> to vector<2x4x32xf32>
    %57 = arith.mulf %0, %56 : vector<2x4x32xf32>
    %cst_26 = arith.constant dense<0.000000e+00> : vector<2x32xf32>
    %58 = vector.multi_reduction <add>, %57, %cst_26 [1] : vector<2x4x32xf32> to vector<2x32xf32>
    %59 = arith.truncf %58 : vector<2x32xf32> to vector<2x32xbf16>
    %c0_27 = arith.constant 0 : index
    %c0_28 = arith.constant 0 : index
    %60 = vector.load %arg9[%c0_27, %c0_28] : memref<32x768xbf16, #tpu.memory_space<vmem>>, vector<32x768xbf16>
    %cst_29 = arith.constant dense<0.000000e+00> : vector<2x768xf32>
    %61 = tpu.matmul %59, %60, %cst_29 {dimension_numbers = #tpu.dot_dimension_numbers<[1], [0], [0], [1], [0, 0, 1, 1], [], []>} : vector<2x32xbf16>, vector<32x768xbf16>, vector<2x768xf32> -> vector<2x768xf32>
    %c0_30 = arith.constant 0 : index
    %c0_31 = arith.constant 0 : index
    %62 = vector.load %arg10[%c0_30, %c0_31] : memref<1x768xf32, #tpu.memory_space<vmem>>, vector<1x768xf32>
    %63 = vector.broadcast %62 : vector<1x768xf32> to vector<2x768xf32>
    %64 = arith.addf %61, %63 : vector<2x768xf32>
    %cst_32 = arith.constant 0.000000e+00 : f32
    %65 = vector.broadcast %cst_32 : f32 to vector<2x768xf32>
    %66 = arith.maximumf %64, %65 : vector<2x768xf32>
    %c0_33 = arith.constant 0 : index
    %c0_34 = arith.constant 0 : index
    %67 = vector.load %arg13[%c0_33, %c0_34] : memref<6x768xf32, #tpu.memory_space<vmem>>, vector<6x768xf32>
    %cst_35 = arith.constant dense<0.000000e+00> : vector<2x768xf32>
    %68 = tpu.matmul %31, %67, %cst_35 {dimension_numbers = #tpu.dot_dimension_numbers<[1], [0], [0], [1], [0, 0, 1, 1], [], []>} : vector<2x6xf32>, vector<6x768xf32>, vector<2x768xf32> -> vector<2x768xf32>
    %69 = arith.mulf %66, %68 : vector<2x768xf32>
    %70 = arith.truncf %69 : vector<2x768xf32> to vector<2x768xbf16>
    %c0_36 = arith.constant 0 : index
    %c0_37 = arith.constant 0 : index
    %71 = vector.load %arg11[%c0_36, %c0_37] : memref<768x32xbf16, #tpu.memory_space<vmem>>, vector<768x32xbf16>
    %cst_38 = arith.constant dense<0.000000e+00> : vector<2x32xf32>
    %72 = tpu.matmul %70, %71, %cst_38 {dimension_numbers = #tpu.dot_dimension_numbers<[1], [0], [0], [1], [0, 0, 1, 1], [], []>} : vector<2x768xbf16>, vector<768x32xbf16>, vector<2x32xf32> -> vector<2x32xf32>
    %c0_39 = arith.constant 0 : index
    %c0_40 = arith.constant 0 : index
    %73 = vector.load %arg12[%c0_39, %c0_40] : memref<6x32xf32, #tpu.memory_space<vmem>>, vector<6x32xf32>
    %cst_41 = arith.constant dense<0.000000e+00> : vector<2x32xf32>
    %74 = tpu.matmul %31, %73, %cst_41 {dimension_numbers = #tpu.dot_dimension_numbers<[1], [0], [0], [1], [0, 0, 1, 1], [], []>} : vector<2x6xf32>, vector<6x32xf32>, vector<2x32xf32> -> vector<2x32xf32>
    %75 = arith.addf %72, %74 : vector<2x32xf32>
    %c0_42 = arith.constant 0 : index
    %c0_43 = arith.constant 0 : index
    %76 = vector.load %arg14[%c0_42, %c0_43] : memref<2x32xf32, #tpu.memory_space<vmem>>, vector<2x32xf32>
    tpu.vector_store %arg14[%c0_42, %c0_43], %75 {strides = array<i32>} : memref<2x32xf32, #tpu.memory_space<vmem>>, vector<2x32xf32>,
    return
  }
  func.func @transform_0(%arg0: i32) -> (i32, i32, i32) {
    %c0_i32 = arith.constant 0 : i32
    %c0_i32_0 = arith.constant 0 : i32
    %c0_i32_1 = arith.constant 0 : i32
    return %arg0, %c0_i32, %c0_i32_0 : i32, i32, i32
  }
  func.func @transform_1(%arg0: i32) -> (i32, i32) {
    %c0_i32 = arith.constant 0 : i32
    %c0_i32_0 = arith.constant 0 : i32
    %c0_i32_1 = arith.constant 0 : i32
    return %c0_i32, %c0_i32_0 : i32, i32
  }
  func.func @transform_2(%arg0: i32) -> (i32, i32) {
    %c0_i32 = arith.constant 0 : i32
    %c0_i32_0 = arith.constant 0 : i32
    %c0_i32_1 = arith.constant 0 : i32
    return %c0_i32, %c0_i32_0 : i32, i32
  }
  func.func @transform_3(%arg0: i32) -> (i32, i32) {
    %c0_i32 = arith.constant 0 : i32
    %c0_i32_0 = arith.constant 0 : i32
    %c0_i32_1 = arith.constant 0 : i32
    return %c0_i32, %c0_i32_0 : i32, i32
  }
  func.func @transform_4(%arg0: i32) -> (i32, i32) {
    %c0_i32 = arith.constant 0 : i32
    %c0_i32_0 = arith.constant 0 : i32
    %c0_i32_1 = arith.constant 0 : i32
    return %c0_i32, %c0_i32_0 : i32, i32
  }
  func.func @transform_5(%arg0: i32) -> (i32, i32) {
    %c0_i32 = arith.constant 0 : i32
    %c0_i32_0 = arith.constant 0 : i32
    %c0_i32_1 = arith.constant 0 : i32
    return %c0_i32, %c0_i32_0 : i32, i32
  }
  func.func @transform_6(%arg0: i32) -> (i32, i32) {
    %c0_i32 = arith.constant 0 : i32
    %c0_i32_0 = arith.constant 0 : i32
    %c0_i32_1 = arith.constant 0 : i32
    return %c0_i32, %c0_i32_0 : i32, i32
  }
  func.func @transform_7(%arg0: i32) -> (i32, i32) {
    %c0_i32 = arith.constant 0 : i32
    %c0_i32_0 = arith.constant 0 : i32
    %c0_i32_1 = arith.constant 0 : i32
    return %c0_i32, %c0_i32_0 : i32, i32
  }
  func.func @transform_8(%arg0: i32) -> (i32, i32) {
    %c0_i32 = arith.constant 0 : i32
    %c0_i32_0 = arith.constant 0 : i32
    %c0_i32_1 = arith.constant 0 : i32
    return %c0_i32, %c0_i32_0 : i32, i32
  }
  func.func @transform_9(%arg0: i32) -> (i32, i32) {
    %c0_i32 = arith.constant 0 : i32
    %c0_i32_0 = arith.constant 0 : i32
    %c0_i32_1 = arith.constant 0 : i32
    return %c0_i32, %c0_i32_0 : i32, i32
  }
  func.func @transform_10(%arg0: i32) -> (i32, i32) {
    %c0_i32 = arith.constant 0 : i32
    %c0_i32_0 = arith.constant 0 : i32
    %c0_i32_1 = arith.constant 0 : i32
    return %c0_i32, %c0_i32_0 : i32, i32
  }
  func.func @transform_11(%arg0: i32) -> (i32, i32) {
    %c0_i32 = arith.constant 0 : i32
    %c0_i32_0 = arith.constant 0 : i32
    %c0_i32_1 = arith.constant 0 : i32
    return %c0_i32, %c0_i32_0 : i32, i32
  }
  func.func @transform_12(%arg0: i32) -> (i32, i32) {
    %c0_i32 = arith.constant 0 : i32
    %c0_i32_0 = arith.constant 0 : i32
    %c0_i32_1 = arith.constant 0 : i32
    return %c0_i32, %c0_i32_0 : i32, i32
  }
  func.func @transform_13(%arg0: i32) -> (i32, i32) {
    %c0_i32 = arith.constant 0 : i32
    %c0_i32_0 = arith.constant 0 : i32
    return %arg0, %c0_i32 : i32, i32
  }
}

</mosaic_0001>

<llo_original>
// kernel: tpu_custom_call.1
$region0: #{tpu_custom_call.1}
  #allocation0 [shape = 'u32[]', space=smem, size = 0x4, offset = 0x4, fixed_abs, tag = 'smem constant byte address 0x4 - core index']
  #allocation1 [shape = 'u32[72,128]{1,0:T(1,128)}', space=vmem, size = 0x9000, scoped, tag = 'internal scratch']
  %s0 = inlined_call_operand.vmem [shape: f32[2,4,32], index: 0, kind: input, shape index: {}]
  %s1 = inlined_call_operand.vmem [shape: f32[6,16], index: 1, kind: input, shape index: {}]
  %s2 = inlined_call_operand.vmem [shape: f32[16,32], index: 2, kind: input, shape index: {}]
  %s3 = inlined_call_operand.vmem [shape: f32[1,32], index: 3, kind: input, shape index: {}]
  %s4 = inlined_call_operand.vmem [shape: f32[32,48], index: 4, kind: input, shape index: {}]
  %s5 = inlined_call_operand.vmem [shape: f32[1,48], index: 5, kind: input, shape index: {}]
  %s6 = inlined_call_operand.vmem [shape: f32[16,16], index: 6, kind: input, shape index: {}]
  %s7 = inlined_call_operand.vmem [shape: f32[1,16], index: 7, kind: input, shape index: {}]
  %s8 = inlined_call_operand.vmem [shape: bf16[32,768], index: 8, kind: input, shape index: {}]
  %s9 = inlined_call_operand.vmem [shape: f32[1,768], index: 9, kind: input, shape index: {}]
  %s10 = inlined_call_operand.vmem [shape: bf16[768,32], index: 10, kind: input, shape index: {}]
  %s11 = inlined_call_operand.vmem [shape: f32[6,32], index: 11, kind: input, shape index: {}]
  %s12 = inlined_call_operand.vmem [shape: f32[6,768], index: 12, kind: input, shape index: {}]
  %s13 = inlined_call_operand.hbm [shape: f32[2,32], index: 13, kind: output, shape index: {}]
  %s14 = sld [smem:[#allocation0]]
  $region62: #{tpu_custom_call.1} parent=0
    _
  %s16 = ssub.s32 1, %s14
  %s17 = scalar_select 0, %s16, %s14
  $region1: #{tpu_custom_call.1} parent=0
    #allocation2 [shape = 'u8[1024]{0}', space=vmem, size = 0x400, scoped, tag = 'output window, operand 0, single buffered']
    #allocation3 [shape = 's32[1]{0}', space=sflag, size = 0x4, scoped, tag = 'scoped memory for tpu_custom_call.1']
    %18 = vsyncpa [#allocation3], 0
    // Predicated region
    $region2: #{tpu_custom_call.1} parent=1 // pred_check
      _
    $region3: #{tpu_custom_call.1} parent=1 // pred_check_branch
      %20 = sbr.rel (0) target = $region5
    $region4: #{tpu_custom_call.1} parent=1 // pred_region
      _
    $region5: #{tpu_custom_call.1} parent=1 // pred_fallthru
      _
    // Predicated region
    $region6: #{tpu_custom_call.1} parent=1 // pred_check
      _
    $region7: #{tpu_custom_call.1} parent=1 // pred_check_branch
      %22 = sbr.rel (0) target = $region9
    $region8: #{tpu_custom_call.1} parent=1 // pred_region
      _
    $region9: #{tpu_custom_call.1} parent=1 // pred_fallthru
      _
    // Predicated region
    $region10: #{tpu_custom_call.1} parent=1 // pred_check
      _
    $region11: #{tpu_custom_call.1} parent=1 // pred_check_branch
      %24 = sbr.rel (0) target = $region13
    $region12: #{tpu_custom_call.1} parent=1 // pred_region
      _
    $region13: #{tpu_custom_call.1} parent=1 // pred_fallthru
      _
    // Predicated region
    $region14: #{tpu_custom_call.1} parent=1 // pred_check
      _
    $region15: #{tpu_custom_call.1} parent=1 // pred_check_branch
      %26 = sbr.rel (0) target = $region17
    $region16: #{tpu_custom_call.1} parent=1 // pred_region
      _
    $region17: #{tpu_custom_call.1} parent=1 // pred_fallthru
      _
    // Predicated region
    $region18: #{tpu_custom_call.1} parent=1 // pred_check
      _
    $region19: #{tpu_custom_call.1} parent=1 // pred_check_branch
      %28 = sbr.rel (0) target = $region21
    $region20: #{tpu_custom_call.1} parent=1 // pred_region
      _
    $region21: #{tpu_custom_call.1} parent=1 // pred_fallthru
      _
    // Predicated region
    $region22: #{tpu_custom_call.1} parent=1 // pred_check
      _
    $region23: #{tpu_custom_call.1} parent=1 // pred_check_branch
      %30 = sbr.rel (0) target = $region25
    $region24: #{tpu_custom_call.1} parent=1 // pred_region
      _
    $region25: #{tpu_custom_call.1} parent=1 // pred_fallthru
      _
    // Predicated region
    $region26: #{tpu_custom_call.1} parent=1 // pred_check
      _
    $region27: #{tpu_custom_call.1} parent=1 // pred_check_branch
      %32 = sbr.rel (0) target = $region29
    $region28: #{tpu_custom_call.1} parent=1 // pred_region
      _
    $region29: #{tpu_custom_call.1} parent=1 // pred_fallthru
      _
    // Predicated region
    $region30: #{tpu_custom_call.1} parent=1 // pred_check
      _
    $region31: #{tpu_custom_call.1} parent=1 // pred_check_branch
      %34 = sbr.rel (0) target = $region33
    $region32: #{tpu_custom_call.1} parent=1 // pred_region
      _
    $region33: #{tpu_custom_call.1} parent=1 // pred_fallthru
      _
    // Predicated region
    $region34: #{tpu_custom_call.1} parent=1 // pred_check
      _
    $region35: #{tpu_custom_call.1} parent=1 // pred_check_branch
      %36 = sbr.rel (0) target = $region37
    $region36: #{tpu_custom_call.1} parent=1 // pred_region
      _
    $region37: #{tpu_custom_call.1} parent=1 // pred_fallthru
      _
    // Predicated region
    $region38: #{tpu_custom_call.1} parent=1 // pred_check
      _
    $region39: #{tpu_custom_call.1} parent=1 // pred_check_branch
      %38 = sbr.rel (0) target = $region41
    $region40: #{tpu_custom_call.1} parent=1 // pred_region
      _
    $region41: #{tpu_custom_call.1} parent=1 // pred_fallthru
      _
    // Predicated region
    $region42: #{tpu_custom_call.1} parent=1 // pred_check
      _
    $region43: #{tpu_custom_call.1} parent=1 // pred_check_branch
      %40 = sbr.rel (0) target = $region45
    $region44: #{tpu_custom_call.1} parent=1 // pred_region
      _
    $region45: #{tpu_custom_call.1} parent=1 // pred_fallthru
      _
    // Predicated region
    $region46: #{tpu_custom_call.1} parent=1 // pred_check
      _
    $region47: #{tpu_custom_call.1} parent=1 // pred_check_branch
      %42 = sbr.rel (0) target = $region49
    $region48: #{tpu_custom_call.1} parent=1 // pred_region
      _
    $region49: #{tpu_custom_call.1} parent=1 // pred_fallthru
      _
    // Predicated region
    $region50: #{tpu_custom_call.1} parent=1 // pred_check
      _
    $region51: #{tpu_custom_call.1} parent=1 // pred_check_branch
      %44 = sbr.rel (0) target = $region53
    $region52: #{tpu_custom_call.1} parent=1 // pred_region
      _
    $region53: #{tpu_custom_call.1} parent=1 // pred_fallthru
      _
    %v46 = vld [vmem:[%s0] sm:$0xf]
    %v47 = vld [vmem:[%s0 + $0x4] sm:$0xf]
    %v48 = vld [vmem:[%s1] sm:$0x3f]
    %v49 = vld [vmem:[%s4] sm:$0xff]
    %v50 = vld [vmem:[%s4 + $0x8] sm:$0xff]
    %v51 = vld [vmem:[%s4 + $0x10] sm:$0xff]
    %v52 = vld [vmem:[%s4 + $0x18] sm:$0xff]
    %v53 = vld [vmem:[%s5] sm:$0x1]
    %v55 = vperm.slane %v53, 0
    %59 = vst [vmem:[#allocation1] ss:$2 sm:$0xff] %v46
    %s60 = scalar_lea.vmem [#allocation1], 1
    %61 = vst [vmem:[%s60] ss:$2 sm:$0xff] %v47
    %v62 = vld.sshfl [vmem:[#allocation1] sm:$0xff pattern:$0x75316420]
    %vm63 = vcmask 261120
    %v64 = vsel %vm63, %v62, 0
    %66 = vmatpush.msra.mxu0 0.0
    %67 = vmatpush.msra.mxu0 0.0
    %68 = vmatpush.msra.mxu0 0.0
    %69 = vmatpush.msra.mxu0 0.0
    %70 = vmatpush.msra.mxu0 0.0
    %71 = vmatpush.msra.mxu0 0.0
    %72 = vmatpush.msra.mxu0 0.0
    %73 = vmatpush.msra.mxu0 0.0
    %74 = vmatpush.msra.mxu0 0.0
    %75 = vmatpush.msra.mxu0 0.0
    %76 = vmatpush.msra.mxu0 0.0
    %77 = vmatpush.msra.mxu0 0.0
    %78 = vmatpush.msra.mxu0 %v52
    %79 = vmatpush.msra.mxu0 %v51
    %80 = vmatpush.msra.mxu0 %v50
    %81 = vmatpush.msra.mxu0 %v49
    %82 = vmatmul.f32.gmra.mxu0 %v64
    %v83 = vpop.f32.mrf.mxu0
    %v84 = vadd.f32 %v55, %v83
    %85 = vdwg.mxu0
    %v87 = vrot.slane %v84, 4
    %v89 = vld [vmem:[%s2] sm:$0xff]
    %v90 = vld [vmem:[%s2 + $0x8] sm:$0xff]
    %v91 = vld [vmem:[%s3] sm:$0x1]
    %v93 = vperm.slane %v91, 0
    %vm95 = vcmask 130048
    %v97 = vsel %vm95, %v48, 0
    %99 = vmatpush.msra.mxu0 0.0
    %100 = vmatpush.msra.mxu0 0.0
    %101 = vmatpush.msra.mxu0 0.0
    %102 = vmatpush.msra.mxu0 0.0
    %103 = vmatpush.msra.mxu0 0.0
    %104 = vmatpush.msra.mxu0 0.0
    %105 = vmatpush.msra.mxu0 0.0
    %106 = vmatpush.msra.mxu0 0.0
    %107 = vmatpush.msra.mxu0 0.0
    %108 = vmatpush.msra.mxu0 0.0
    %109 = vmatpush.msra.mxu0 0.0
    %110 = vmatpush.msra.mxu0 0.0
    %111 = vmatpush.msra.mxu0 0.0
    %112 = vmatpush.msra.mxu0 0.0
    %113 = vmatpush.msra.mxu0 %v90
    %114 = vmatpush.msra.mxu0 %v89
    %115 = vmatmul.f32.gmra.mxu0 %v97
    %v116 = vpop.f32.mrf.mxu0
    %v117 = vadd.f32 %v93, %v116
    %118 = vdwg.mxu0
    %v119 = vsel %vm63, %v84, 0
    %v122 = vsel %vm63, %v117, 0
    %124 = vmatpush.xpose.msra.mxu0 0.0
    %125 = vmatpush.xpose.msra.mxu0 0.0
    %126 = vmatpush.xpose.msra.mxu0 0.0
    %127 = vmatpush.xpose.msra.mxu0 0.0
    %128 = vmatpush.xpose.msra.mxu0 0.0
    %129 = vmatpush.xpose.msra.mxu0 0.0
    %130 = vmatpush.xpose.msra.mxu0 0.0
    %131 = vmatpush.xpose.msra.mxu0 0.0
    %132 = vmatpush.xpose.msra.mxu0 0.0
    %133 = vmatpush.xpose.msra.mxu0 0.0
    %134 = vmatpush.xpose.msra.mxu0 0.0
    %135 = vmatpush.xpose.msra.mxu0 0.0
    %136 = vmatpush.xpose.msra.mxu0 0.0
    %137 = vmatpush.xpose.msra.mxu0 0.0
    %138 = vmatpush.xpose.msra.mxu0 0.0
    %139 = vmatpush.xpose.msra.mxu0 %v122
    %140 = vmatmul.f32.gmra.mxu0 %v119
    %v141 = vpop.f32.mrf.mxu0
    %v142 = vadd.f32 0.0, %v141
    %143 = vdwg.mxu0
    %v145 = vrot.slane %v142, 4
    %vm147 = vcmask 44032
    %v148 = vsel %vm147, %v142, -inf
    %v149 = vrot.slane %v148, 4
    %v150 = vmax.f32 %v148, %v149
    %v151 = vrot.slane %v150, 2
    %v152 = vmax.f32 %v150, %v151
    %v153 = vrot.slane %v152, 1
    %v154 = vmax.f32 %v152, %v153
    %v155 = vsel %vm147, %v145, -inf
    %v156 = vrot.slane %v155, 4
    %v157 = vmax.f32 %v155, %v156
    %v158 = vrot.slane %v157, 2
    %v159 = vmax.f32 %v157, %v158
    %v160 = vrot.slane %v159, 1
    %v161 = vmax.f32 %v159, %v160
    %v162 = vlaneseq
    %v163 = vand.u32 %v162, 127
    %vm166 = vcmask 1041409
    %v167 = vsel %vm166, %v161, %v154
    %vm169 = vcmask 41984
    %v170 = vsel %vm169, %v167, -inf
    %171 = vmax.xlane.f32.xlu0 %v170
    %v172 = vpop.xlane.xlu0 %171
    %v174 = vrot.slane %v172, 1
    %vm177 = vcmp.ge.f32.partialorder %v154, %v172
    %vm178 = vcmp.ge.f32.partialorder %v161, %v174
    %v179 = vsel %vm177, %v163, 6
    %v180 = vsel %vm178, %v163, 6
    %v181 = vrot.slane %v180, 7
    %v182 = vsel %vm166, %v181, %v179
    %v183 = vsel %vm169, %v182, 2147483647
    %v184 = vand.u32 %v183, 65535
    %v185 = vshra.s32 %v183, 16
    %v186 = vcvt.s32.f32 %v184
    %v187 = vcvt.s32.f32 %v185
    %188 = vmin.xlane.f32.xlu0 %v187
    %v189 = vpop.xlane.xlu0 %188
    %vm190 = vcmp.eq.f32.partialorder %v187, %v189
    %v191 = vsel %vm190, %v186, inf
    %192 = vmin.xlane.f32.xlu0 %v191
    %v193 = vpop.xlane.xlu0 %192
    %v194 = vcvt.f32.s32 %v193
    %v195 = vcvt.f32.s32 %v189
    %v196 = vshll.u32 %v195, 16
    %v197 = vadd.s32 %v196, %v194
    %vm198 = vcmp.eq.s32.totalorder %v163, %v197
    %v199 = vsel %vm198, 1, 0
    %v200 = vcvt.s32.f32 %v199
    %vm201 = vcmask 48128
    %v203 = vsel %vm201, %v200, 0
    %vm205 = vcmask 1045504
    %v206 = vsel %vm205, %v48, 0
    %208 = vmatpush.msra.mxu0 0.0
    %209 = vmatpush.msra.mxu0 0.0
    %210 = vmatpush.msra.mxu0 0.0
    %211 = vmatpush.msra.mxu0 0.0
    %212 = vmatpush.msra.mxu0 0.0
    %213 = vmatpush.msra.mxu0 0.0
    %214 = vmatpush.msra.mxu0 0.0
    %215 = vmatpush.msra.mxu0 0.0
    %216 = vmatpush.msra.mxu0 0.0
    %217 = vmatpush.msra.mxu0 0.0
    %218 = vmatpush.msra.mxu0 0.0
    %219 = vmatpush.msra.mxu0 0.0
    %220 = vmatpush.msra.mxu0 0.0
    %221 = vmatpush.msra.mxu0 0.0
    %222 = vmatpush.msra.mxu0 0.0
    %223 = vmatpush.msra.mxu0 %v206
    %224 = vmatmul.f32.gmra.mxu0 %v203
    %v225 = vpop.f32.mrf.mxu0
    %v226 = vadd.f32 0.0, %v225
    %227 = vdwg.mxu0
    %v228 = vld [vmem:[%s6] sm:$0xff]
    %v229 = vld [vmem:[%s6 + $0x8] sm:$0xff]
    %v230 = vld [vmem:[%s7] sm:$0x1]
    %v232 = vperm.slane %v230, 0
    %v235 = vsel %vm95, %v226, 0
    %237 = vmatpush.msra.mxu0 0.0
    %238 = vmatpush.msra.mxu0 0.0
    %239 = vmatpush.msra.mxu0 0.0
    %240 = vmatpush.msra.mxu0 0.0
    %241 = vmatpush.msra.mxu0 0.0
    %242 = vmatpush.msra.mxu0 0.0
    %243 = vmatpush.msra.mxu0 0.0
    %244 = vmatpush.msra.mxu0 0.0
    %245 = vmatpush.msra.mxu0 0.0
    %246 = vmatpush.msra.mxu0 0.0
    %247 = vmatpush.msra.mxu0 0.0
    %248 = vmatpush.msra.mxu0 0.0
    %249 = vmatpush.msra.mxu0 0.0
    %250 = vmatpush.msra.mxu0 0.0
    %251 = vmatpush.msra.mxu0 %v229
    %252 = vmatpush.msra.mxu0 %v228
    %253 = vmatmul.f32.gmra.mxu0 %v235
    %v254 = vpop.f32.mrf.mxu0
    %v255 = vadd.f32 %v232, %v254
    %256 = vdwg.mxu0
    %v258 = vrot.slane %v255, 1
    %v259 = vperm.slane %v255, 0
    %v260 = vperm.slane %v258, 0
    %261 = vrot.lane.b32.xlu0 %v259, 32
    %v262 = vpop.permute.xlu0 %261
    %263 = vrot.lane.b32.xlu0 %v260, 32
    %v264 = vpop.permute.xlu0 %263
    %v267 = vmul.f32 %v84, %v262
    %v268 = vmul.f32 %v87, %v264
    %271 = vst [vmem:[#allocation1] ss:$2 sm:$0xff] %v267
    %v272 = vld.sshfl [vmem:[#allocation1] sm:$0xff pattern:$0x75316420]
    %s273 = scalar_lea.vmem [#allocation1], 16
    %274 = vst [vmem:[%s273] ss:$2 sm:$0xff] %v268
    %v275 = vld.sshfl [vmem:[#allocation1 + $0x10] sm:$0xff pattern:$0x75316420]
    %276 = vrot.lane.b32.xlu0 %v272, 96
    %v277 = vpop.permute.xlu0 %276
    %278 = vrot.lane.b32.xlu0 %v275, 96
    %v279 = vpop.permute.xlu0 %278
    %vm282 = vcmask 125952
    %v283 = vsel %vm282, %v277, 0.0
    %284 = vadd.xlane.f32.xlu0 %v283
    %v285 = vpop.xlane.xlu0 %284
    %v286 = vsel %vm282, %v279, 0.0
    %287 = vadd.xlane.f32.xlu0 %v286
    %v288 = vpop.xlane.xlu0 %287
    %v291 = vperm.slane %v285, %v163
    %v292 = vperm.slane %v288, %v163
    %v293 = vsel %vm166, %v292, %v291
    %vm295 = vcmask 25600
    %v296 = vsel %vm295, %v293, -inf
    %297 = vmax.xlane.f32.xlu0 %v296
    %v298 = vpop.xlane.xlu0 %297
    %v300 = vperm.slane %v298, 0
    %v301 = vperm.slane %v298, 1
    %vm304 = vcmp.ge.f32.partialorder %v285, %v300
    %vm305 = vcmp.ge.f32.partialorder %v288, %v301
    %v306 = vlaneseq
    %v307 = vshrl.u32 %v306, 7
    %309 = vset.pattern.permute.xlu0 %v307
    %310 = vperm.xlu0 %309, %v163
    %v311 = vpop.permute.xlu0 %310
    %v312 = vsel %vm304, %v311, 4
    %v313 = vsel %vm305, %v311, 4
    %314 = vset.pattern.permute.xlu0 0
    %315 = vperm.xlu0 %314, %v312
    %v316 = vpop.permute.xlu0 %315
    %317 = vset.pattern.permute.xlu0 0
    %318 = vperm.xlu0 %317, %v313
    %v319 = vpop.permute.xlu0 %318
    %v320 = vperm.slane %v316, %v163
    %v321 = vperm.slane %v319, %v163
    %v322 = vsel %vm166, %v321, %v320
    %v323 = vsel %vm295, %v322, 2147483647
    %v324 = vand.u32 %v323, 65535
    %v325 = vshra.s32 %v323, 16
    %v326 = vcvt.s32.f32 %v324
    %v327 = vcvt.s32.f32 %v325
    %328 = vmin.xlane.f32.xlu0 %v327
    %v329 = vpop.xlane.xlu0 %328
    %vm330 = vcmp.eq.f32.partialorder %v327, %v329
    %v331 = vsel %vm330, %v326, inf
    %332 = vmin.xlane.f32.xlu0 %v331
    %v333 = vpop.xlane.xlu0 %332
    %v334 = vcvt.f32.s32 %v333
    %v335 = vcvt.f32.s32 %v329
    %v336 = vshll.u32 %v335, 16
    %v337 = vadd.s32 %v336, %v334
    %vm338 = vcmp.eq.s32.totalorder %v163, %v337
    %v339 = vsel %vm338, 1, 0
    %v340 = vcvt.s32.f32 %v339
    %v341 = vperm.slane %v340, 0
    %v342 = vlaneseq
    %v343 = vshrl.u32 %v342, 7
    %345 = vset.pattern.permute.xlu0 %v343
    %346 = vperm.xlu0 %345, %v341
    %v347 = vpop.permute.xlu0 %346
    %v348 = vperm.slane %v340, 1
    %v349 = vlaneseq
    %v350 = vshrl.u32 %v349, 7
    %352 = vset.pattern.permute.xlu0 %v350
    %353 = vperm.xlu0 %352, %v348
    %v354 = vpop.permute.xlu0 %353
    %v355 = vmul.f32 %v46, %v347
    %v356 = vmul.f32 %v47, %v354
    %vm357 = vcmask 257024
    %v358 = vsel %vm357, %v355, 0.0
    %v359 = vrot.slane %v358, 4
    %v360 = vadd.f32 %v358, %v359
    %v361 = vrot.slane %v360, 2
    %v362 = vadd.f32 %v360, %v361
    %v363 = vrot.slane %v362, 1
    %v364 = vadd.f32 %v362, %v363
    %v365 = vsel %vm357, %v356, 0.0
    %v366 = vrot.slane %v365, 4
    %v367 = vadd.f32 %v365, %v366
    %v368 = vrot.slane %v367, 2
    %v369 = vadd.f32 %v367, %v368
    %v370 = vrot.slane %v369, 1
    %v371 = vadd.f32 %v369, %v370
    %v372 = vpack.c.bf16 %v364, %v364
    %v373 = vpack.c.bf16 %v371, %v371
    %v374 = vld [vmem:[%s8] sm:$0xff]
    %v375 = vld [vmem:[%s8 + $0x8] sm:$0xff]
    %v376 = vld [vmem:[%s8 + $0x10] sm:$0xff]
    %v377 = vld [vmem:[%s8 + $0x18] sm:$0xff]
    %v378 = vld [vmem:[%s8 + $0x20] sm:$0xff]
    %v379 = vld [vmem:[%s8 + $0x28] sm:$0xff]
    %v380 = vld [vmem:[%s8 + $0x30] sm:$0xff]
    %v381 = vld [vmem:[%s8 + $0x38] sm:$0xff]
    %v382 = vld [vmem:[%s8 + $0x40] sm:$0xff]
    %v383 = vld [vmem:[%s8 + $0x48] sm:$0xff]
    %v384 = vld [vmem:[%s8 + $0x50] sm:$0xff]
    %v385 = vld [vmem:[%s8 + $0x58] sm:$0xff]
    %v386 = vld [vmem:[%s9] sm:$0x3f]
    %v388 = vperm.slane %v386, 0
    %v389 = vperm.slane %v386, 1
    %v390 = vperm.slane %v386, 2
    %v391 = vperm.slane %v386, 3
    %v392 = vperm.slane %v386, 4
    %v393 = vperm.slane %v386, 5
    %v402 = vunpack.c.l.b16 %v372
    %v403 = vunpack.c.l.b16 %v373
    %v404 = vsel %vm166, %v403, %v402
    %v405 = vpack.c.b16 %v404, %v404
    %v418 = vunpack.c.l.b16 %v374
    %v419 = vunpack.c.h.b16 %v374
    %v420 = vunpack.c.l.b16 %v375
    %v421 = vunpack.c.h.b16 %v375
    %v422 = vunpack.c.l.b16 %v376
    %v423 = vunpack.c.h.b16 %v376
    %v424 = vunpack.c.l.b16 %v377
    %v425 = vunpack.c.h.b16 %v377
    %v426 = vunpack.c.l.b16 %v378
    %v427 = vunpack.c.h.b16 %v378
    %v428 = vunpack.c.l.b16 %v379
    %v429 = vunpack.c.h.b16 %v379
    %v430 = vunpack.c.l.b16 %v380
    %v431 = vunpack.c.h.b16 %v380
    %v432 = vunpack.c.l.b16 %v381
    %v433 = vunpack.c.h.b16 %v381
    %v434 = vunpack.c.l.b16 %v382
    %v435 = vunpack.c.h.b16 %v382
    %v436 = vunpack.c.l.b16 %v383
    %v437 = vunpack.c.h.b16 %v383
    %v438 = vunpack.c.l.b16 %v384
    %v439 = vunpack.c.h.b16 %v384
    %v440 = vunpack.c.l.b16 %v385
    %v441 = vunpack.c.h.b16 %v385
    %v442 = vpack.c.b16 %v424, %v418
    %v443 = vpack.c.b16 %v425, %v419
    %v444 = vpack.c.b16 %v426, %v420
    %v445 = vpack.c.b16 %v427, %v421
    %v446 = vpack.c.b16 %v428, %v422
    %v447 = vpack.c.b16 %v429, %v423
    %v448 = vpack.c.b16 %v436, %v430
    %v449 = vpack.c.b16 %v437, %v431
    %v450 = vpack.c.b16 %v438, %v432
    %v451 = vpack.c.b16 %v439, %v433
    %v452 = vpack.c.b16 %v440, %v434
    %v453 = vpack.c.b16 %v441, %v435
    %v467 = vsel %vm63, %v405, 0
    %469 = vmatpush.bf16.msra.mxu0 0
    %470 = vmatpush.bf16.msra.mxu0 0
    %471 = vmatpush.bf16.msra.mxu0 0
    %472 = vmatpush.bf16.msra.mxu0 0
    %473 = vmatpush.bf16.msra.mxu0 0
    %474 = vmatpush.bf16.msra.mxu0 0
    %475 = vmatpush.bf16.msra.mxu0 %v448
    %476 = vmatpush.bf16.msra.mxu0 %v442
    %477 = vmatmul.bf16.gmra.mxu0 %v467
    %v478 = vpop.f32.mrf.mxu0
    %v479 = vadd.f32 %v388, %v478
    %v480 = vpop.f32.mrf.mxu0
    %481 = vdwg.mxu0
    %482 = vmatpush.bf16.msra.mxu0 0
    %483 = vmatpush.bf16.msra.mxu0 0
    %484 = vmatpush.bf16.msra.mxu0 0
    %485 = vmatpush.bf16.msra.mxu0 0
    %486 = vmatpush.bf16.msra.mxu0 0
    %487 = vmatpush.bf16.msra.mxu0 0
    %488 = vmatpush.bf16.msra.mxu0 %v449
    %489 = vmatpush.bf16.msra.mxu0 %v443
    %490 = vmatmul.bf16.gmra.mxu0 %v467
    %v491 = vpop.f32.mrf.mxu0
    %v492 = vadd.f32 %v389, %v491
    %v493 = vpop.f32.mrf.mxu0
    %494 = vdwg.mxu0
    %495 = vmatpush.bf16.msra.mxu0 0
    %496 = vmatpush.bf16.msra.mxu0 0
    %497 = vmatpush.bf16.msra.mxu0 0
    %498 = vmatpush.bf16.msra.mxu0 0
    %499 = vmatpush.bf16.msra.mxu0 0
    %500 = vmatpush.bf16.msra.mxu0 0
    %501 = vmatpush.bf16.msra.mxu0 %v450
    %502 = vmatpush.bf16.msra.mxu0 %v444
    %503 = vmatmul.bf16.gmra.mxu0 %v467
    %v504 = vpop.f32.mrf.mxu0
    %v505 = vadd.f32 %v390, %v504
    %v506 = vpop.f32.mrf.mxu0
    %507 = vdwg.mxu0
    %508 = vmatpush.bf16.msra.mxu0 0
    %509 = vmatpush.bf16.msra.mxu0 0
    %510 = vmatpush.bf16.msra.mxu0 0
    %511 = vmatpush.bf16.msra.mxu0 0
    %512 = vmatpush.bf16.msra.mxu0 0
    %513 = vmatpush.bf16.msra.mxu0 0
    %514 = vmatpush.bf16.msra.mxu0 %v451
    %515 = vmatpush.bf16.msra.mxu0 %v445
    %516 = vmatmul.bf16.gmra.mxu0 %v467
    %v517 = vpop.f32.mrf.mxu0
    %v518 = vadd.f32 %v391, %v517
    %v519 = vpop.f32.mrf.mxu0
    %520 = vdwg.mxu0
    %521 = vmatpush.bf16.msra.mxu0 0
    %522 = vmatpush.bf16.msra.mxu0 0
    %523 = vmatpush.bf16.msra.mxu0 0
    %524 = vmatpush.bf16.msra.mxu0 0
    %525 = vmatpush.bf16.msra.mxu0 0
    %526 = vmatpush.bf16.msra.mxu0 0
    %527 = vmatpush.bf16.msra.mxu0 %v452
    %528 = vmatpush.bf16.msra.mxu0 %v446
    %529 = vmatmul.bf16.gmra.mxu0 %v467
    %v530 = vpop.f32.mrf.mxu0
    %v531 = vadd.f32 %v392, %v530
    %v532 = vpop.f32.mrf.mxu0
    %533 = vdwg.mxu0
    %534 = vmatpush.bf16.msra.mxu0 0
    %535 = vmatpush.bf16.msra.mxu0 0
    %536 = vmatpush.bf16.msra.mxu0 0
    %537 = vmatpush.bf16.msra.mxu0 0
    %538 = vmatpush.bf16.msra.mxu0 0
    %539 = vmatpush.bf16.msra.mxu0 0
    %540 = vmatpush.bf16.msra.mxu0 %v453
    %541 = vmatpush.bf16.msra.mxu0 %v447
    %542 = vmatmul.bf16.gmra.mxu0 %v467
    %v543 = vpop.f32.mrf.mxu0
    %v544 = vadd.f32 %v393, %v543
    %v545 = vpop.f32.mrf.mxu0
    %546 = vdwg.mxu0
    %v547 = vmax.f32 %v479, 0.0
    %v548 = vmax.f32 %v492, 0.0
    %v549 = vmax.f32 %v505, 0.0
    %v550 = vmax.f32 %v518, 0.0
    %v551 = vmax.f32 %v531, 0.0
    %v552 = vmax.f32 %v544, 0.0
    %v553 = vld [vmem:[%s12] sm:$0x3f]
    %v554 = vld [vmem:[%s12 + $0x8] sm:$0x3f]
    %v555 = vld [vmem:[%s12 + $0x10] sm:$0x3f]
    %v556 = vld [vmem:[%s12 + $0x18] sm:$0x3f]
    %v557 = vld [vmem:[%s12 + $0x20] sm:$0x3f]
    %v558 = vld [vmem:[%s12 + $0x28] sm:$0x3f]
    %v560 = vsel %vm205, %v553, 0
    %v563 = vsel %vm205, %v554, 0
    %v566 = vsel %vm205, %v555, 0
    %v569 = vsel %vm205, %v556, 0
    %v572 = vsel %vm205, %v557, 0
    %v575 = vsel %vm205, %v558, 0
    %577 = vmatpush.msra.mxu0 0.0
    %578 = vmatpush.msra.mxu0 0.0
    %579 = vmatpush.msra.mxu0 0.0
    %580 = vmatpush.msra.mxu0 0.0
    %581 = vmatpush.msra.mxu0 0.0
    %582 = vmatpush.msra.mxu0 0.0
    %583 = vmatpush.msra.mxu0 0.0
    %584 = vmatpush.msra.mxu0 0.0
    %585 = vmatpush.msra.mxu0 0.0
    %586 = vmatpush.msra.mxu0 0.0
    %587 = vmatpush.msra.mxu0 0.0
    %588 = vmatpush.msra.mxu0 0.0
    %589 = vmatpush.msra.mxu0 0.0
    %590 = vmatpush.msra.mxu0 0.0
    %591 = vmatpush.msra.mxu0 0.0
    %592 = vmatpush.msra.mxu0 %v560
    %593 = vmatmul.f32.gmra.mxu0 %v203
    %v594 = vpop.f32.mrf.mxu0
    %v595 = vadd.f32 0.0, %v594
    %596 = vdwg.mxu0
    %597 = vmatpush.msra.mxu0 0.0
    %598 = vmatpush.msra.mxu0 0.0
    %599 = vmatpush.msra.mxu0 0.0
    %600 = vmatpush.msra.mxu0 0.0
    %601 = vmatpush.msra.mxu0 0.0
    %602 = vmatpush.msra.mxu0 0.0
    %603 = vmatpush.msra.mxu0 0.0
    %604 = vmatpush.msra.mxu0 0.0
    %605 = vmatpush.msra.mxu0 0.0
    %606 = vmatpush.msra.mxu0 0.0
    %607 = vmatpush.msra.mxu0 0.0
    %608 = vmatpush.msra.mxu0 0.0
    %609 = vmatpush.msra.mxu0 0.0
    %610 = vmatpush.msra.mxu0 0.0
    %611 = vmatpush.msra.mxu0 0.0
    %612 = vmatpush.msra.mxu0 %v563
    %613 = vmatmul.f32.gmra.mxu0 %v203
    %v614 = vpop.f32.mrf.mxu0
    %v615 = vadd.f32 0.0, %v614
    %616 = vdwg.mxu0
    %617 = vmatpush.msra.mxu0 0.0
    %618 = vmatpush.msra.mxu0 0.0
    %619 = vmatpush.msra.mxu0 0.0
    %620 = vmatpush.msra.mxu0 0.0
    %621 = vmatpush.msra.mxu0 0.0
    %622 = vmatpush.msra.mxu0 0.0
    %623 = vmatpush.msra.mxu0 0.0
    %624 = vmatpush.msra.mxu0 0.0
    %625 = vmatpush.msra.mxu0 0.0
    %626 = vmatpush.msra.mxu0 0.0
    %627 = vmatpush.msra.mxu0 0.0
    %628 = vmatpush.msra.mxu0 0.0
    %629 = vmatpush.msra.mxu0 0.0
    %630 = vmatpush.msra.mxu0 0.0
    %631 = vmatpush.msra.mxu0 0.0
    %632 = vmatpush.msra.mxu0 %v566
    %633 = vmatmul.f32.gmra.mxu0 %v203
    %v634 = vpop.f32.mrf.mxu0
    %v635 = vadd.f32 0.0, %v634
    %636 = vdwg.mxu0
    %637 = vmatpush.msra.mxu0 0.0
    %638 = vmatpush.msra.mxu0 0.0
    %639 = vmatpush.msra.mxu0 0.0
    %640 = vmatpush.msra.mxu0 0.0
    %641 = vmatpush.msra.mxu0 0.0
    %642 = vmatpush.msra.mxu0 0.0
    %643 = vmatpush.msra.mxu0 0.0
    %644 = vmatpush.msra.mxu0 0.0
    %645 = vmatpush.msra.mxu0 0.0
    %646 = vmatpush.msra.mxu0 0.0
    %647 = vmatpush.msra.mxu0 0.0
    %648 = vmatpush.msra.mxu0 0.0
    %649 = vmatpush.msra.mxu0 0.0
    %650 = vmatpush.msra.mxu0 0.0
    %651 = vmatpush.msra.mxu0 0.0
    %652 = vmatpush.msra.mxu0 %v569
    %653 = vmatmul.f32.gmra.mxu0 %v203
    %v654 = vpop.f32.mrf.mxu0
    %v655 = vadd.f32 0.0, %v654
    %656 = vdwg.mxu0
    %657 = vmatpush.msra.mxu0 0.0
    %658 = vmatpush.msra.mxu0 0.0
    %659 = vmatpush.msra.mxu0 0.0
    %660 = vmatpush.msra.mxu0 0.0
    %661 = vmatpush.msra.mxu0 0.0
    %662 = vmatpush.msra.mxu0 0.0
    %663 = vmatpush.msra.mxu0 0.0
    %664 = vmatpush.msra.mxu0 0.0
    %665 = vmatpush.msra.mxu0 0.0
    %666 = vmatpush.msra.mxu0 0.0
    %667 = vmatpush.msra.mxu0 0.0
    %668 = vmatpush.msra.mxu0 0.0
    %669 = vmatpush.msra.mxu0 0.0
    %670 = vmatpush.msra.mxu0 0.0
    %671 = vmatpush.msra.mxu0 0.0
    %672 = vmatpush.msra.mxu0 %v572
    %673 = vmatmul.f32.gmra.mxu0 %v203
    %v674 = vpop.f32.mrf.mxu0
    %v675 = vadd.f32 0.0, %v674
    %676 = vdwg.mxu0
    %677 = vmatpush.msra.mxu0 0.0
    %678 = vmatpush.msra.mxu0 0.0
    %679 = vmatpush.msra.mxu0 0.0
    %680 = vmatpush.msra.mxu0 0.0
    %681 = vmatpush.msra.mxu0 0.0
    %682 = vmatpush.msra.mxu0 0.0
    %683 = vmatpush.msra.mxu0 0.0
    %684 = vmatpush.msra.mxu0 0.0
    %685 = vmatpush.msra.mxu0 0.0
    %686 = vmatpush.msra.mxu0 0.0
    %687 = vmatpush.msra.mxu0 0.0
    %688 = vmatpush.msra.mxu0 0.0
    %689 = vmatpush.msra.mxu0 0.0
    %690 = vmatpush.msra.mxu0 0.0
    %691 = vmatpush.msra.mxu0 0.0
    %692 = vmatpush.msra.mxu0 %v575
    %693 = vmatmul.f32.gmra.mxu0 %v203
    %v694 = vpop.f32.mrf.mxu0
    %v695 = vadd.f32 0.0, %v694
    %696 = vdwg.mxu0
    %v697 = vmul.f32 %v547, %v595
    %v698 = vmul.f32 %v548, %v615
    %v699 = vmul.f32 %v549, %v635
    %v700 = vmul.f32 %v550, %v655
    %v701 = vmul.f32 %v551, %v675
    %v702 = vmul.f32 %v552, %v695
    %v703 = vpack.c.bf16 %v697, %v697
    %v704 = vpack.c.bf16 %v698, %v698
    %v705 = vpack.c.bf16 %v699, %v699
    %v706 = vpack.c.bf16 %v700, %v700
    %v707 = vpack.c.bf16 %v701, %v701
    %v708 = vpack.c.bf16 %v702, %v702
    %v709 = vld [vmem:[%s10] sm:$0xf]
    %v710 = vld [vmem:[%s10 + $0x4] sm:$0xf]
    %v711 = vld [vmem:[%s10 + $0x8] sm:$0xf]
    %v712 = vld [vmem:[%s10 + $0xc] sm:$0xf]
    %v713 = vld [vmem:[%s10 + $0x10] sm:$0xf]
    %v714 = vld [vmem:[%s10 + $0x14] sm:$0xf]
    %v715 = vld [vmem:[%s10 + $0x18] sm:$0xf]
    %v716 = vld [vmem:[%s10 + $0x1c] sm:$0xf]
    %v717 = vld [vmem:[%s10 + $0x20] sm:$0xf]
    %v718 = vld [vmem:[%s10 + $0x24] sm:$0xf]
    %v719 = vld [vmem:[%s10 + $0x28] sm:$0xf]
    %v720 = vld [vmem:[%s10 + $0x2c] sm:$0xf]
    %v721 = vld [vmem:[%s10 + $0x30] sm:$0xf]
    %v722 = vld [vmem:[%s10 + $0x34] sm:$0xf]
    %v723 = vld [vmem:[%s10 + $0x38] sm:$0xf]
    %v724 = vld [vmem:[%s10 + $0x3c] sm:$0xf]
    %v725 = vld [vmem:[%s10 + $0x40] sm:$0xf]
    %v726 = vld [vmem:[%s10 + $0x44] sm:$0xf]
    %v727 = vld [vmem:[%s10 + $0x48] sm:$0xf]
    %v728 = vld [vmem:[%s10 + $0x4c] sm:$0xf]
    %v729 = vld [vmem:[%s10 + $0x50] sm:$0xf]
    %v730 = vld [vmem:[%s10 + $0x54] sm:$0xf]
    %v731 = vld [vmem:[%s10 + $0x58] sm:$0xf]
    %v732 = vld [vmem:[%s10 + $0x5c] sm:$0xf]
    %v733 = vld [vmem:[%s10 + $0x60] sm:$0xf]
    %v734 = vld [vmem:[%s10 + $0x64] sm:$0xf]
    %v735 = vld [vmem:[%s10 + $0x68] sm:$0xf]
    %v736 = vld [vmem:[%s10 + $0x6c] sm:$0xf]
    %v737 = vld [vmem:[%s10 + $0x70] sm:$0xf]
    %v738 = vld [vmem:[%s10 + $0x74] sm:$0xf]
    %v739 = vld [vmem:[%s10 + $0x78] sm:$0xf]
    %v740 = vld [vmem:[%s10 + $0x7c] sm:$0xf]
    %v741 = vld [vmem:[%s10 + $0x80] sm:$0xf]
    %v742 = vld [vmem:[%s10 + $0x84] sm:$0xf]
    %v743 = vld [vmem:[%s10 + $0x88] sm:$0xf]
    %v744 = vld [vmem:[%s10 + $0x8c] sm:$0xf]
    %v745 = vld [vmem:[%s10 + $0x90] sm:$0xf]
    %v746 = vld [vmem:[%s10 + $0x94] sm:$0xf]
    %v747 = vld [vmem:[%s10 + $0x98] sm:$0xf]
    %v748 = vld [vmem:[%s10 + $0x9c] sm:$0xf]
    %v749 = vld [vmem:[%s10 + $0xa0] sm:$0xf]
    %v750 = vld [vmem:[%s10 + $0xa4] sm:$0xf]
    %v751 = vld [vmem:[%s10 + $0xa8] sm:$0xf]
    %v752 = vld [vmem:[%s10 + $0xac] sm:$0xf]
    %v753 = vld [vmem:[%s10 + $0xb0] sm:$0xf]
    %v754 = vld [vmem:[%s10 + $0xb4] sm:$0xf]
    %v755 = vld [vmem:[%s10 + $0xb8] sm:$0xf]
    %v756 = vld [vmem:[%s10 + $0xbc] sm:$0xf]
    %v757 = vld [vmem:[%s10 + $0xc0] sm:$0xf]
    %v758 = vld [vmem:[%s10 + $0xc4] sm:$0xf]
    %v759 = vld [vmem:[%s10 + $0xc8] sm:$0xf]
    %v760 = vld [vmem:[%s10 + $0xcc] sm:$0xf]
    %v761 = vld [vmem:[%s10 + $0xd0] sm:$0xf]
    %v762 = vld [vmem:[%s10 + $0xd4] sm:$0xf]
    %v763 = vld [vmem:[%s10 + $0xd8] sm:$0xf]
    %v764 = vld [vmem:[%s10 + $0xdc] sm:$0xf]
    %v765 = vld [vmem:[%s10 + $0xe0] sm:$0xf]
    %v766 = vld [vmem:[%s10 + $0xe4] sm:$0xf]
    %v767 = vld [vmem:[%s10 + $0xe8] sm:$0xf]
    %v768 = vld [vmem:[%s10 + $0xec] sm:$0xf]
    %v769 = vld [vmem:[%s10 + $0xf0] sm:$0xf]
    %v770 = vld [vmem:[%s10 + $0xf4] sm:$0xf]
    %v771 = vld [vmem:[%s10 + $0xf8] sm:$0xf]
    %v772 = vld [vmem:[%s10 + $0xfc] sm:$0xf]
    %v773 = vld [vmem:[%s10 + $0x100] sm:$0xf]
    %v774 = vld [vmem:[%s10 + $0x104] sm:$0xf]
    %v775 = vld [vmem:[%s10 + $0x108] sm:$0xf]
    %v776 = vld [vmem:[%s10 + $0x10c] sm:$0xf]
    %v777 = vld [vmem:[%s10 + $0x110] sm:$0xf]
    %v778 = vld [vmem:[%s10 + $0x114] sm:$0xf]
    %v779 = vld [vmem:[%s10 + $0x118] sm:$0xf]
    %v780 = vld [vmem:[%s10 + $0x11c] sm:$0xf]
    %v781 = vld [vmem:[%s10 + $0x120] sm:$0xf]
    %v782 = vld [vmem:[%s10 + $0x124] sm:$0xf]
    %v783 = vld [vmem:[%s10 + $0x128] sm:$0xf]
    %v784 = vld [vmem:[%s10 + $0x12c] sm:$0xf]
    %v785 = vld [vmem:[%s10 + $0x130] sm:$0xf]
    %v786 = vld [vmem:[%s10 + $0x134] sm:$0xf]
    %v787 = vld [vmem:[%s10 + $0x138] sm:$0xf]
    %v788 = vld [vmem:[%s10 + $0x13c] sm:$0xf]
    %v789 = vld [vmem:[%s10 + $0x140] sm:$0xf]
    %v790 = vld [vmem:[%s10 + $0x144] sm:$0xf]
    %v791 = vld [vmem:[%s10 + $0x148] sm:$0xf]
    %v792 = vld [vmem:[%s10 + $0x14c] sm:$0xf]
    %v793 = vld [vmem:[%s10 + $0x150] sm:$0xf]
    %v794 = vld [vmem:[%s10 + $0x154] sm:$0xf]
    %v795 = vld [vmem:[%s10 + $0x158] sm:$0xf]
    %v796 = vld [vmem:[%s10 + $0x15c] sm:$0xf]
    %v797 = vld [vmem:[%s10 + $0x160] sm:$0xf]
    %v798 = vld [vmem:[%s10 + $0x164] sm:$0xf]
    %v799 = vld [vmem:[%s10 + $0x168] sm:$0xf]
    %v800 = vld [vmem:[%s10 + $0x16c] sm:$0xf]
    %v801 = vld [vmem:[%s10 + $0x170] sm:$0xf]
    %v802 = vld [vmem:[%s10 + $0x174] sm:$0xf]
    %v803 = vld [vmem:[%s10 + $0x178] sm:$0xf]
    %v804 = vld [vmem:[%s10 + $0x17c] sm:$0xf]
    %v805 = vld [vmem:[%s11] sm:$0x3f]
    %v807 = vsel %vm205, %v805, 0
    %809 = vmatpush.msra.mxu0 0.0
    %810 = vmatpush.msra.mxu0 0.0
    %811 = vmatpush.msra.mxu0 0.0
    %812 = vmatpush.msra.mxu0 0.0
    %813 = vmatpush.msra.mxu0 0.0
    %814 = vmatpush.msra.mxu0 0.0
    %815 = vmatpush.msra.mxu0 0.0
    %816 = vmatpush.msra.mxu0 0.0
    %817 = vmatpush.msra.mxu0 0.0
    %818 = vmatpush.msra.mxu0 0.0
    %819 = vmatpush.msra.mxu0 0.0
    %820 = vmatpush.msra.mxu0 0.0
    %821 = vmatpush.msra.mxu0 0.0
    %822 = vmatpush.msra.mxu0 0.0
    %823 = vmatpush.msra.mxu0 0.0
    %824 = vmatpush.msra.mxu0 %v807
    %825 = vmatmul.f32.gmra.mxu0 %v203
    %v826 = vpop.f32.mrf.mxu0
    %v827 = vadd.f32 0.0, %v826
    %828 = vdwg.mxu0
    %v925 = vunpack.c.l.b16 %v709
    %v926 = vunpack.c.l.b16 %v710
    %v927 = vunpack.c.l.b16 %v711
    %v928 = vunpack.c.l.b16 %v712
    %v929 = vunpack.c.l.b16 %v713
    %v930 = vunpack.c.l.b16 %v714
    %v931 = vunpack.c.l.b16 %v715
    %v932 = vunpack.c.l.b16 %v716
    %v933 = vunpack.c.l.b16 %v717
    %v934 = vunpack.c.l.b16 %v718
    %v935 = vunpack.c.l.b16 %v719
    %v936 = vunpack.c.l.b16 %v720
    %v937 = vunpack.c.l.b16 %v721
    %v938 = vunpack.c.l.b16 %v722
    %v939 = vunpack.c.l.b16 %v723
    %v940 = vunpack.c.l.b16 %v724
    %v941 = vunpack.c.l.b16 %v725
    %v942 = vunpack.c.l.b16 %v726
    %v943 = vunpack.c.l.b16 %v727
    %v944 = vunpack.c.l.b16 %v728
    %v945 = vunpack.c.l.b16 %v729
    %v946 = vunpack.c.l.b16 %v730
    %v947 = vunpack.c.l.b16 %v731
    %v948 = vunpack.c.l.b16 %v732
    %v949 = vunpack.c.l.b16 %v733
    %v950 = vunpack.c.l.b16 %v734
    %v951 = vunpack.c.l.b16 %v735
    %v952 = vunpack.c.l.b16 %v736
    %v953 = vunpack.c.l.b16 %v737
    %v954 = vunpack.c.l.b16 %v738
    %v955 = vunpack.c.l.b16 %v739
    %v956 = vunpack.c.l.b16 %v740
    %v957 = vunpack.c.l.b16 %v741
    %v958 = vunpack.c.l.b16 %v742
    %v959 = vunpack.c.l.b16 %v743
    %v960 = vunpack.c.l.b16 %v744
    %v961 = vunpack.c.l.b16 %v745
    %v962 = vunpack.c.l.b16 %v746
    %v963 = vunpack.c.l.b16 %v747
    %v964 = vunpack.c.l.b16 %v748
    %v965 = vunpack.c.l.b16 %v749
    %v966 = vunpack.c.l.b16 %v750
    %v967 = vunpack.c.l.b16 %v751
    %v968 = vunpack.c.l.b16 %v752
    %v969 = vunpack.c.l.b16 %v753
    %v970 = vunpack.c.l.b16 %v754
    %v971 = vunpack.c.l.b16 %v755
    %v972 = vunpack.c.l.b16 %v756
    %v973 = vunpack.c.l.b16 %v757
    %v974 = vunpack.c.l.b16 %v758
    %v975 = vunpack.c.l.b16 %v759
    %v976 = vunpack.c.l.b16 %v760
    %v977 = vunpack.c.l.b16 %v761
    %v978 = vunpack.c.l.b16 %v762
    %v979 = vunpack.c.l.b16 %v763
    %v980 = vunpack.c.l.b16 %v764
    %v981 = vunpack.c.l.b16 %v765
    %v982 = vunpack.c.l.b16 %v766
    %v983 = vunpack.c.l.b16 %v767
    %v984 = vunpack.c.l.b16 %v768
    %v985 = vunpack.c.l.b16 %v769
    %v986 = vunpack.c.l.b16 %v770
    %v987 = vunpack.c.l.b16 %v771
    %v988 = vunpack.c.l.b16 %v772
    %v989 = vunpack.c.l.b16 %v773
    %v990 = vunpack.c.l.b16 %v774
    %v991 = vunpack.c.l.b16 %v775
    %v992 = vunpack.c.l.b16 %v776
    %v993 = vunpack.c.l.b16 %v777
    %v994 = vunpack.c.l.b16 %v778
    %v995 = vunpack.c.l.b16 %v779
    %v996 = vunpack.c.l.b16 %v780
    %v997 = vunpack.c.l.b16 %v781
    %v998 = vunpack.c.l.b16 %v782
    %v999 = vunpack.c.l.b16 %v783
    %v1000 = vunpack.c.l.b16 %v784
    %v1001 = vunpack.c.l.b16 %v785
    %v1002 = vunpack.c.l.b16 %v786
    %v1003 = vunpack.c.l.b16 %v787
    %v1004 = vunpack.c.l.b16 %v788
    %v1005 = vunpack.c.l.b16 %v789
    %v1006 = vunpack.c.l.b16 %v790
    %v1007 = vunpack.c.l.b16 %v791
    %v1008 = vunpack.c.l.b16 %v792
    %v1009 = vunpack.c.l.b16 %v793
    %v1010 = vunpack.c.l.b16 %v794
    %v1011 = vunpack.c.l.b16 %v795
    %v1012 = vunpack.c.l.b16 %v796
    %v1013 = vunpack.c.l.b16 %v797
    %v1014 = vunpack.c.l.b16 %v798
    %v1015 = vunpack.c.l.b16 %v799
    %v1016 = vunpack.c.l.b16 %v800
    %v1017 = vunpack.c.l.b16 %v801
    %v1018 = vunpack.c.l.b16 %v802
    %v1019 = vunpack.c.l.b16 %v803
    %v1020 = vunpack.c.l.b16 %v804
    %v1021 = vpack.c.b16 %v926, %v925
    %v1022 = vpack.c.b16 %v928, %v927
    %v1023 = vpack.c.b16 %v930, %v929
    %v1024 = vpack.c.b16 %v932, %v931
    %v1025 = vpack.c.b16 %v934, %v933
    %v1026 = vpack.c.b16 %v936, %v935
    %v1027 = vpack.c.b16 %v938, %v937
    %v1028 = vpack.c.b16 %v940, %v939
    %v1029 = vpack.c.b16 %v942, %v941
    %v1030 = vpack.c.b16 %v944, %v943
    %v1031 = vpack.c.b16 %v946, %v945
    %v1032 = vpack.c.b16 %v948, %v947
    %v1033 = vpack.c.b16 %v950, %v949
    %v1034 = vpack.c.b16 %v952, %v951
    %v1035 = vpack.c.b16 %v954, %v953
    %v1036 = vpack.c.b16 %v956, %v955
    %v1037 = vpack.c.b16 %v958, %v957
    %v1038 = vpack.c.b16 %v960, %v959
    %v1039 = vpack.c.b16 %v962, %v961
    %v1040 = vpack.c.b16 %v964, %v963
    %v1041 = vpack.c.b16 %v966, %v965
    %v1042 = vpack.c.b16 %v968, %v967
    %v1043 = vpack.c.b16 %v970, %v969
    %v1044 = vpack.c.b16 %v972, %v971
    %v1045 = vpack.c.b16 %v974, %v973
    %v1046 = vpack.c.b16 %v976, %v975
    %v1047 = vpack.c.b16 %v978, %v977
    %v1048 = vpack.c.b16 %v980, %v979
    %v1049 = vpack.c.b16 %v982, %v981
    %v1050 = vpack.c.b16 %v984, %v983
    %v1051 = vpack.c.b16 %v986, %v985
    %v1052 = vpack.c.b16 %v988, %v987
    %v1053 = vpack.c.b16 %v990, %v989
    %v1054 = vpack.c.b16 %v992, %v991
    %v1055 = vpack.c.b16 %v994, %v993
    %v1056 = vpack.c.b16 %v996, %v995
    %v1057 = vpack.c.b16 %v998, %v997
    %v1058 = vpack.c.b16 %v1000, %v999
    %v1059 = vpack.c.b16 %v1002, %v1001
    %v1060 = vpack.c.b16 %v1004, %v1003
    %v1061 = vpack.c.b16 %v1006, %v1005
    %v1062 = vpack.c.b16 %v1008, %v1007
    %v1063 = vpack.c.b16 %v1010, %v1009
    %v1064 = vpack.c.b16 %v1012, %v1011
    %v1065 = vpack.c.b16 %v1014, %v1013
    %v1066 = vpack.c.b16 %v1016, %v1015
    %v1067 = vpack.c.b16 %v1018, %v1017
    %v1068 = vpack.c.b16 %v1020, %v1019
    %1117 = vmatpush.bf16.msra.mxu0 %v1028
    %1118 = vmatpush.bf16.msra.mxu0 %v1027
    %1119 = vmatpush.bf16.msra.mxu0 %v1026
    %1120 = vmatpush.bf16.msra.mxu0 %v1025
    %1121 = vmatpush.bf16.msra.mxu0 %v1024
    %1122 = vmatpush.bf16.msra.mxu0 %v1023
    %1123 = vmatpush.bf16.msra.mxu0 %v1022
    %1124 = vmatpush.bf16.msra.mxu0 %v1021
    %1125 = vmatmul.bf16.gmra.mxu0 %v703
    %v1126 = vpop.f32.mrf.mxu0
    %v1127 = vadd.f32 %v827, %v1126
    %v1128 = vpop.f32.mrf.mxu0
    %1129 = vdwg.mxu0
    %1130 = vmatpush.bf16.msra.mxu0 %v1036
    %1131 = vmatpush.bf16.msra.mxu0 %v1035
    %1132 = vmatpush.bf16.msra.mxu0 %v1034
    %1133 = vmatpush.bf16.msra.mxu0 %v1033
    %1134 = vmatpush.bf16.msra.mxu0 %v1032
    %1135 = vmatpush.bf16.msra.mxu0 %v1031
    %1136 = vmatpush.bf16.msra.mxu0 %v1030
    %1137 = vmatpush.bf16.msra.mxu0 %v1029
    %1138 = vmatmul.bf16.gmra.mxu0 %v704
    %v1139 = vpop.f32.mrf.mxu0
    %v1140 = vadd.f32 %v1127, %v1139
    %v1141 = vpop.f32.mrf.mxu0
    %1142 = vdwg.mxu0
    %1143 = vmatpush.bf16.msra.mxu0 %v1044
    %1144 = vmatpush.bf16.msra.mxu0 %v1043
    %1145 = vmatpush.bf16.msra.mxu0 %v1042
    %1146 = vmatpush.bf16.msra.mxu0 %v1041
    %1147 = vmatpush.bf16.msra.mxu0 %v1040
    %1148 = vmatpush.bf16.msra.mxu0 %v1039
    %1149 = vmatpush.bf16.msra.mxu0 %v1038
    %1150 = vmatpush.bf16.msra.mxu0 %v1037
    %1151 = vmatmul.bf16.gmra.mxu0 %v705
    %v1152 = vpop.f32.mrf.mxu0
    %v1153 = vadd.f32 %v1140, %v1152
    %v1154 = vpop.f32.mrf.mxu0
    %1155 = vdwg.mxu0
    %1156 = vmatpush.bf16.msra.mxu0 %v1052
    %1157 = vmatpush.bf16.msra.mxu0 %v1051
    %1158 = vmatpush.bf16.msra.mxu0 %v1050
    %1159 = vmatpush.bf16.msra.mxu0 %v1049
    %1160 = vmatpush.bf16.msra.mxu0 %v1048
    %1161 = vmatpush.bf16.msra.mxu0 %v1047
    %1162 = vmatpush.bf16.msra.mxu0 %v1046
    %1163 = vmatpush.bf16.msra.mxu0 %v1045
    %1164 = vmatmul.bf16.gmra.mxu0 %v706
    %v1165 = vpop.f32.mrf.mxu0
    %v1166 = vadd.f32 %v1153, %v1165
    %v1167 = vpop.f32.mrf.mxu0
    %1168 = vdwg.mxu0
    %1169 = vmatpush.bf16.msra.mxu0 %v1060
    %1170 = vmatpush.bf16.msra.mxu0 %v1059
    %1171 = vmatpush.bf16.msra.mxu0 %v1058
    %1172 = vmatpush.bf16.msra.mxu0 %v1057
    %1173 = vmatpush.bf16.msra.mxu0 %v1056
    %1174 = vmatpush.bf16.msra.mxu0 %v1055
    %1175 = vmatpush.bf16.msra.mxu0 %v1054
    %1176 = vmatpush.bf16.msra.mxu0 %v1053
    %1177 = vmatmul.bf16.gmra.mxu0 %v707
    %v1178 = vpop.f32.mrf.mxu0
    %v1179 = vadd.f32 %v1166, %v1178
    %v1180 = vpop.f32.mrf.mxu0
    %1181 = vdwg.mxu0
    %1182 = vmatpush.bf16.msra.mxu0 %v1068
    %1183 = vmatpush.bf16.msra.mxu0 %v1067
    %1184 = vmatpush.bf16.msra.mxu0 %v1066
    %1185 = vmatpush.bf16.msra.mxu0 %v1065
    %1186 = vmatpush.bf16.msra.mxu0 %v1064
    %1187 = vmatpush.bf16.msra.mxu0 %v1063
    %1188 = vmatpush.bf16.msra.mxu0 %v1062
    %1189 = vmatpush.bf16.msra.mxu0 %v1061
    %1190 = vmatmul.bf16.gmra.mxu0 %v708
    %v1191 = vpop.f32.mrf.mxu0
    %v1192 = vadd.f32 %v1179, %v1191
    %v1193 = vpop.f32.mrf.mxu0
    %1194 = vdwg.mxu0
    %vm1195 = vcmask 254976
    %1196 = vst.msk [vmem:[#allocation2] sm:$0x3] %vm1195, %v1192
    // Predicated region
    $region54: #{tpu_custom_call.1} parent=1 // pred_check
      _
    $region55: #{tpu_custom_call.1} parent=1 // pred_check_branch
      %1198 = sbr.rel (0) target = $region57
    $region56: #{tpu_custom_call.1} parent=1 // pred_region
      %1200 = vsyncadd [#allocation3], 0
      %s1202 = sshll.u32 [#allocation2], 4
      %s1203 = int_to_ptr.vmem [resolvable:$true] %s1202
      %s1204 = sshll.u32 %s13, 4
      %s1205 = int_to_ptr.hbm [resolvable:$true] %s1204
      %1207 = dma.vmem_to_hbm [thread:$0]  %s1203, 32, %s1205, [#allocation3]
    $region57: #{tpu_custom_call.1} parent=1 // pred_fallthru
      _
    // Predicated region
    $region58: #{tpu_custom_call.1} parent=1 // pred_check
      _
    $region59: #{tpu_custom_call.1} parent=1 // pred_check_branch
      %1209 = sbr.rel (0) target = $region61
    $region60: #{tpu_custom_call.1} parent=1 // pred_region
      %1211 = dma.done [#allocation3], 32
    $region61: #{tpu_custom_call.1} parent=1 // pred_fallthru
      _
    %1212 = vsyncpa [#allocation3], 1

</llo_original>
